<compile_context>
chip_gen: v5e
topology: v5e:2x2
jax: 0.10.0
libtpu: 0.0.40
codegen_flags: <defaults>
</compile_context>

<pallas_src>
import functools

import jax
import jax.numpy as jnp
from jax import lax
from jax.experimental import pallas as pl
from jax.experimental.pallas import tpu as pltpu

_SUBLANES = 8
_ACC_ROWS = 8                         # per-chunk accumulator block: (8, C)
_TARGET_TILE_ELEMS = 1 << 20          # ~4 MiB f32 per input per pipeline buffer
_VMEM_LIMIT_BYTES = 40 * 1024 * 1024  # 2 inputs x 2 buffers x 4 MiB + temps
_MIN_PALLAS_ELEMENTS = 1 << 20        # below this, fused XLA beats any launch


def _cdiv(a, b):
    return (a + b - 1) // b


def _num_tensorcores():
    """Best-effort TensorCore count (2 on v7x megacore, 1 on v5e/v6e)."""
    try:
        info = pltpu.get_tpu_info()
    except Exception:
        return 1
    for name in ("num_cores", "core_count", "num_tensorcores", "tensor_core_count"):
        v = getattr(info, name, None)
        try:
            v = int(v)
        except (TypeError, ValueError):
            continue
        if v > 0:
            return v
    return 1


def _loss_kernel(output_ref, label_ref, partial_ref, *,
                 n_rows, tile_rows, steps, masked):
    """Accumulates sum(label * log(output)) for one chunk into an (8, C) block."""
    i = pl.program_id(1)

    @pl.when(i == 0)
    def _init():
        partial_ref[...] = jnp.zeros_like(partial_ref)

    # Stream in native dtype, upcast in-register.
    o = output_ref[...].astype(jnp.float32)
    l = label_ref[...].astype(jnp.float32)
    # No eps clamp -- matches torch reference exactly (0 -> -inf / NaN).
    contrib = l * jnp.log(o)

    if masked:
        # Rows past the true row count come from the out-of-bounds part of the
        # boundary block (unspecified data) -- zero them before accumulating.
        c = pl.program_id(0)
        row0 = (c * steps + i) * tile_rows
        rid = row0 + lax.broadcasted_iota(jnp.int32, contrib.shape, 0)
        contrib = jnp.where(rid < n_rows, contrib, 0.0)

    # Fold (tile_rows, C) -> (8, C) with pure vreg-wise adds (sublane-aligned
    # reshape, no relayout, no cross-lane work) and accumulate into the
    # resident output block.
    cols = contrib.shape[-1]
    partial_ref[...] += jnp.sum(
        contrib.reshape(tile_rows // _ACC_ROWS, _ACC_ROWS, cols), axis=0)


def contrastive_loss(output, label, *, tile_rows=None, num_chunks=None,
                     min_pallas_elements=_MIN_PALLAS_ELEMENTS):
    """-mean(label * log(output)) over all elements (ContrastiveLoss.forward)."""
    if output.shape != label.shape:
        raise ValueError(f"shape mismatch: {output.shape} vs {label.shape}")
    n = int(output.size)
    if n == 0:
        return jnp.float32(jnp.nan)   # torch.mean over an empty tensor -> nan

    def _fallback():
        return -jnp.mean(label.astype(jnp.float32) * jnp.log(output.astype(jnp.float32)))

    # Small problems (the actual DSSM batches) and shapes the kernel does not
    # tile well: XLA's fused elementwise+reduce is cheaper than any launch.
    if n < min_pallas_elements or output.ndim < 2:
        return _fallback()

    C = int(output.shape[-1])
    R = n // C
    # Row-tile alignment: native sublane tiling of the narrowest input dtype.
    row_align = max(_SUBLANES,
                    32 // max(1, output.dtype.itemsize),
                    32 // max(1, label.dtype.itemsize))
    if R < row_align or C > _TARGET_TILE_ELEMS // _SUBLANES:
        return _fallback()

    # 2-D view: identity for 2-D inputs; >2-D inputs collapse leading dims
    # (may relayout once, but keeps the hot path lane-dense).
    out2d = output.reshape(R, C)
    lab2d = label.reshape(R, C)

    # Tile sizing: biggest row tile within the element budget, aligned to the
    # dtype's sublane tile, never larger than the aligned row extent.
    max_rows = (R // row_align) * row_align
    if tile_rows is None:
        tile_rows = _TARGET_TILE_ELEMS // C
    tile_rows = max(row_align, (int(tile_rows) // row_align) * row_align)
    tile_rows = min(tile_rows, max_rows)

    # Chunk axis: one chunk per TensorCore (v7x megacore) when each chunk gets
    # at least two full tiles of real rows; v5e/v6e stay at one chunk.
    if num_chunks is None:
        num_chunks = _num_tensorcores()
    num_chunks = max(1, int(num_chunks))
    if R < num_chunks * 2 * tile_rows:
        num_chunks = 1

    steps = _cdiv(R, num_chunks * tile_rows)
    last_block = _cdiv(R, tile_rows) - 1          # last row-block holding real data
    masked = (num_chunks * steps * tile_rows) != R

    kernel = functools.partial(_loss_kernel, n_rows=R, tile_rows=tile_rows,
                               steps=steps, masked=masked)

    # Clamp block indices so padding blocks (possible when num_chunks > 1)
    # re-read the last real block; their contribution is zeroed by the row mask.
    in_map = lambda c, i: (jnp.minimum(c * steps + i, last_block), 0)

    partials = pl.pallas_call(
        kernel,
        out_shape=jax.ShapeDtypeStruct((num_chunks * _ACC_ROWS, C), jnp.float32),
        grid_spec=pltpu.PrefetchScalarGridSpec(
            num_scalar_prefetch=0,
            grid=(num_chunks, steps),
            in_specs=[
                pl.BlockSpec((tile_rows, C), in_map),
                pl.BlockSpec((tile_rows, C), in_map),
            ],
            # Each chunk owns one resident (8, C) partial-sum block, accumulated
            # in VMEM across the (last, "arbitrary") streaming axis.
            out_specs=pl.BlockSpec((_ACC_ROWS, C), lambda c, i: (c, 0)),
        ),
        compiler_params=pltpu.CompilerParams(
            dimension_semantics=("parallel", "arbitrary"),
            vmem_limit_bytes=_VMEM_LIMIT_BYTES,
        ),
    )(out2d, lab2d)

    # Tiny final reduction over num_chunks * 8 * C partial sums.
    return -jnp.sum(partials) / jnp.float32(n)


if __name__ == "__main__":
    key = jax.random.PRNGKey(0)
    k1, k2, k3, k4 = jax.random.split(key, 4)

    # Small shapes consistent with the DSSM usage: (batch, hidden).
    B, D = 32, 128
    output = jax.nn.sigmoid(jax.random.normal(k1, (B, D), dtype=jnp.float32))
    label = (jax.random.uniform(k2, (B, D)) > 0.5).astype(jnp.float32)
    ref = -jnp.mean(label * jnp.log(output))

    # 1) Force the Pallas path (the default dispatcher would use the fused-XLA
    #    fallback for a problem this small).
    loss = jax.block_until_ready(contrastive_loss(output, label, min_pallas_elements=0))
    assert jnp.allclose(loss, ref, rtol=1e-5, atol=1e-6), (loss, ref)

    # 2) Non-lane-aligned, ragged shape: exercises full-extent-last-dim blocks,
    #    in-kernel row masking and multi-step accumulation.
    B2, D2 = 300, 96
    output2 = jax.nn.sigmoid(jax.random.normal(k3, (B2, D2), dtype=jnp.float32))
    label2 = (jax.random.uniform(k4, (B2, D2)) > 0.5).astype(jnp.float32)
    loss2 = jax.block_until_ready(
        contrastive_loss(output2, label2, min_pallas_elements=0))
    ref2 = -jnp.mean(label2 * jnp.log(output2))
    assert jnp.allclose(loss2, ref2, rtol=1e-4, atol=1e-5), (loss2, ref2)

    # 3) Native bf16 streaming (upcast happens in-register inside the kernel).
    output_bf = output.astype(jnp.bfloat16)
    label_bf = label.astype(jnp.bfloat16)
    loss3 = jax.block_until_ready(
        contrastive_loss(output_bf, label_bf, min_pallas_elements=0))
    ref3 = -jnp.mean(label_bf.astype(jnp.float32) * jnp.log(output_bf.astype(jnp.float32)))
    assert jnp.allclose(loss3, ref3, rtol=1e-5, atol=1e-6), (loss3, ref3)

    # 4) Default dispatch: tiny problem -> plain fused-XLA fallback path.
    loss4 = jax.block_until_ready(contrastive_loss(output, label))
    assert jnp.allclose(loss4, ref, rtol=1e-5, atol=1e-6), (loss4, ref)

    print("KERNEL_OK")
</pallas_src>

<mosaic_0001>
module attributes {stable_mosaic.version = 11 : i64} {
  func.func @_loss_kernel(%arg0: i32, %arg1: i32, %arg2: memref<32x128xf32, #tpu.memory_space<vmem>>, %arg3: memref<32x128xf32, #tpu.memory_space<vmem>>, %arg4: memref<8x128xf32, #tpu.memory_space<vmem>>) attributes {dimension_semantics = [#tpu.dimension_semantics<parallel>, #tpu.dimension_semantics<arbitrary>], iteration_bounds = array<i64: 1, 1>, scalar_prefetch = 0 : i64, scratch_operands = 0 : i64, tpu.core_type = #tpu.core_type<tc>, window_params = [{transform_indices = @transform_0, window_bounds = array<i64: 32, 128>}, {transform_indices = @transform_1, window_bounds = array<i64: 32, 128>}, {transform_indices = @transform_2, window_bounds = array<i64: 8, 128>}]} {
    %c0_i32 = arith.constant 0 : i32
    %0 = arith.cmpi eq, %arg1, %c0_i32 : i32
    %1 = arith.extui %0 : i1 to i32
    %c0_i32_0 = arith.constant 0 : i32
    %2 = arith.cmpi ne, %1, %c0_i32_0 : i32
    scf.if %2 {
      %cst_8 = arith.constant 0.000000e+00 : f32
      %12 = vector.broadcast %cst_8 : f32 to vector<8x128xf32>
      %c0_9 = arith.constant 0 : index
      %c0_10 = arith.constant 0 : index
      %13 = vector.load %arg4[%c0_9, %c0_10] : memref<8x128xf32, #tpu.memory_space<vmem>>, vector<8x128xf32>
      tpu.vector_store %arg4[%c0_9, %c0_10], %12 {strides = array<i32>} : memref<8x128xf32, #tpu.memory_space<vmem>>, vector<8x128xf32>,
    } else {
    }
    %c0 = arith.constant 0 : index
    %c0_1 = arith.constant 0 : index
    %3 = vector.load %arg2[%c0, %c0_1] : memref<32x128xf32, #tpu.memory_space<vmem>>, vector<32x128xf32>
    %c0_2 = arith.constant 0 : index
    %c0_3 = arith.constant 0 : index
    %4 = vector.load %arg3[%c0_2, %c0_3] : memref<32x128xf32, #tpu.memory_space<vmem>>, vector<32x128xf32>
    %5 = math.log %3 : vector<32x128xf32>
    %6 = arith.mulf %4, %5 : vector<32x128xf32>
    %c0_4 = arith.constant 0 : index
    %c0_5 = arith.constant 0 : index
    %7 = vector.load %arg4[%c0_4, %c0_5] : memref<8x128xf32, #tpu.memory_space<vmem>>, vector<8x128xf32>
    %8 = vector.shape_cast %6 : vector<32x128xf32> to vector<4x8x128xf32>
    %cst = arith.constant dense<0.000000e+00> : vector<8x128xf32>
    %9 = vector.multi_reduction <add>, %8, %cst [0] : vector<4x8x128xf32> to vector<8x128xf32>
    %10 = arith.addf %7, %9 : vector<8x128xf32>
    %c0_6 = arith.constant 0 : index
    %c0_7 = arith.constant 0 : index
    %11 = vector.load %arg4[%c0_6, %c0_7] : memref<8x128xf32, #tpu.memory_space<vmem>>, vector<8x128xf32>
    tpu.vector_store %arg4[%c0_6, %c0_7], %10 {strides = array<i32>} : memref<8x128xf32, #tpu.memory_space<vmem>>, vector<8x128xf32>,
    return
  }
  func.func @transform_0(%arg0: i32, %arg1: i32) -> (i32, i32) {
    %c1_i32 = arith.constant 1 : i32
    %0 = arith.muli %arg0, %c1_i32 : i32
    %1 = arith.addi %0, %arg1 : i32
    %c0_i32 = arith.constant 0 : i32
    %2 = arith.minsi %1, %c0_i32 : i32
    %c0_i32_0 = arith.constant 0 : i32
    %c0_i32_1 = arith.constant 0 : i32
    return %2, %c0_i32_0 : i32, i32
  }
  func.func @transform_1(%arg0: i32, %arg1: i32) -> (i32, i32) {
    %c1_i32 = arith.constant 1 : i32
    %0 = arith.muli %arg0, %c1_i32 : i32
    %1 = arith.addi %0, %arg1 : i32
    %c0_i32 = arith.constant 0 : i32
    %2 = arith.minsi %1, %c0_i32 : i32
    %c0_i32_0 = arith.constant 0 : i32
    %c0_i32_1 = arith.constant 0 : i32
    return %2, %c0_i32_0 : i32, i32
  }
  func.func @transform_2(%arg0: i32, %arg1: i32) -> (i32, i32) {
    %c0_i32 = arith.constant 0 : i32
    %c0_i32_0 = arith.constant 0 : i32
    return %arg0, %c0_i32 : i32, i32
  }
}

</mosaic_0001>

<llo_original>
// kernel: tpu_custom_call.1
$region0: #{tpu_custom_call.1}
  #allocation0 [shape = 'u32[]', space=smem, size = 0x4, offset = 0x4, fixed_abs, tag = 'smem constant byte address 0x4 - core index']
  #allocation1 [shape = 'u32[72,128]{1,0:T(1,128)}', space=vmem, size = 0x9000, scoped, tag = 'internal scratch']
  %s0 = inlined_call_operand.hbm [shape: f32[32,128], index: 0, kind: input, shape index: {}]
  %s1 = inlined_call_operand.hbm [shape: f32[32,128], index: 1, kind: input, shape index: {}]
  %s2 = inlined_call_operand.hbm [shape: f32[8,128], index: 2, kind: output, shape index: {}]
  %s3 = sld [smem:[#allocation0]]
  $region30: #{tpu_custom_call.1} parent=0
    _
  %s5 = ssub.s32 1, %s3
  %s6 = scalar_select 0, %s5, %s3
  $region1: #{tpu_custom_call.1} parent=0
    #allocation2 [shape = 'u8[16384]{0}', space=vmem, size = 0x4000, scoped, tag = 'input window, operand 0, single buffered']
    #allocation3 [shape = 's32[1]{0}', space=sflag, size = 0x4, scoped, tag = 'scoped memory for tpu_custom_call.1']
    #allocation4 [shape = 's32[1]{0}', space=sflag, size = 0x4, scoped, tag = 'scoped memory for tpu_custom_call.1']
    #allocation5 [shape = 'u8[16384]{0}', space=vmem, size = 0x4000, scoped, tag = 'input window, operand 1, single buffered']
    #allocation6 [shape = 's32[1]{0}', space=sflag, size = 0x4, scoped, tag = 'scoped memory for tpu_custom_call.1']
    #allocation7 [shape = 'u8[4096]{0}', space=vmem, size = 0x1000, scoped, tag = 'output window, operand 0, single buffered']
    %7 = vsyncpa [#allocation3], 0
    %8 = vsyncpa [#allocation6], 0
    %9 = vsyncpa [#allocation4], 0
    // Predicated region
    $region2: #{tpu_custom_call.1} parent=1 // pred_check
      _
    $region3: #{tpu_custom_call.1} parent=1 // pred_check_branch
      %11 = sbr.rel (0) target = $region5
    $region4: #{tpu_custom_call.1} parent=1 // pred_region
      %s12 = sadd.s32 0, 0
      %p13 = scmp.lt.s32.totalorder %s12, 0
      %s14 = scalar_select %p13, %s12, 0
      %s15 = smul.u32 4, %s14
      %17 = vsyncadd [#allocation3], 0
      %s18 = smul.addr %s15, 8
      %s19 = scalar_lea.hbm %s0, %s18
      %s20 = sshll.u32 %s19, 4
      %s21 = int_to_ptr.hbm [resolvable:$true] %s20
      %s22 = sshll.u32 [#allocation2], 4
      %s23 = int_to_ptr.vmem [resolvable:$true] %s22
      %28 = dma.hbm_to_vmem [thread:$0]  %s21, 512, %s23, [#allocation3], 128, 128, 8
    $region5: #{tpu_custom_call.1} parent=1 // pred_fallthru
      _
    // Predicated region
    $region6: #{tpu_custom_call.1} parent=1 // pred_check
      _
    $region7: #{tpu_custom_call.1} parent=1 // pred_check_branch
      %30 = sbr.rel (0) target = $region9
    $region8: #{tpu_custom_call.1} parent=1 // pred_region
      %s31 = sadd.s32 0, 0
      %p32 = scmp.lt.s32.totalorder %s31, 0
      %s33 = scalar_select %p32, %s31, 0
      %s34 = smul.u32 4, %s33
      %36 = vsyncadd [#allocation6], 0
      %s37 = smul.addr %s34, 8
      %s38 = scalar_lea.hbm %s1, %s37
      %s39 = sshll.u32 %s38, 4
      %s40 = int_to_ptr.hbm [resolvable:$true] %s39
      %s41 = sshll.u32 [#allocation5], 4
      %s42 = int_to_ptr.vmem [resolvable:$true] %s41
      %47 = dma.hbm_to_vmem [thread:$0]  %s40, 512, %s42, [#allocation6], 128, 128, 8
    $region9: #{tpu_custom_call.1} parent=1 // pred_fallthru
      _
    // Predicated region
    $region10: #{tpu_custom_call.1} parent=1 // pred_check
      _
    $region11: #{tpu_custom_call.1} parent=1 // pred_check_branch
      %49 = sbr.rel (0) target = $region13
    $region12: #{tpu_custom_call.1} parent=1 // pred_region
      %51 = dma.done [#allocation3], 512
    $region13: #{tpu_custom_call.1} parent=1 // pred_fallthru
      _
    // Predicated region
    $region14: #{tpu_custom_call.1} parent=1 // pred_check
      _
    $region15: #{tpu_custom_call.1} parent=1 // pred_check_branch
      %53 = sbr.rel (0) target = $region17
    $region16: #{tpu_custom_call.1} parent=1 // pred_region
      %55 = dma.done [#allocation6], 512
    $region17: #{tpu_custom_call.1} parent=1 // pred_fallthru
      _
    %s56 = sadd.s32 0, 0
    %p57 = scmp.lt.s32.totalorder %s56, 0
    %s58 = scalar_select %p57, %s56, 0
    %s59 = smul.u32 4, %s58
    %s60 = sadd.s32 0, 0
    %p61 = scmp.lt.s32.totalorder %s60, 0
    %s62 = scalar_select %p61, %s60, 0
    %s63 = smul.u32 4, %s62
    %p64 = scmp.eq.s32.totalorder 0, 0
    // Predicated region
    $region18: #{tpu_custom_call.1} parent=1 // pred_check
      %p65 = pneg %p64
    $region19: #{tpu_custom_call.1} parent=1 // pred_check_branch
      %67 = sbr.rel (%p65) target = $region21
    $region20: #{tpu_custom_call.1} parent=1 // pred_region
      %68 = vst [vmem:[#allocation7] sm:$0xff] 0.0
    $region21: #{tpu_custom_call.1} parent=1 // pred_fallthru
      _
    %v69 = vld [vmem:[#allocation2] sm:$0xff]
    %v70 = vld [vmem:[#allocation2 + $0x8] sm:$0xff]
    %v71 = vld [vmem:[#allocation2 + $0x10] sm:$0xff]
    %v72 = vld [vmem:[#allocation2 + $0x18] sm:$0xff]
    %v73 = vld [vmem:[#allocation5] sm:$0xff]
    %v74 = vld [vmem:[#allocation5 + $0x8] sm:$0xff]
    %v75 = vld [vmem:[#allocation5 + $0x10] sm:$0xff]
    %v76 = vld [vmem:[#allocation5 + $0x18] sm:$0xff]
    %v77 = vlog2.pop %v69
    %v78 = vmul.f32 %v77, 0.6931472
    %v79 = vlog2.pop %v70
    %v80 = vmul.f32 %v79, 0.6931472
    %v81 = vlog2.pop %v71
    %v82 = vmul.f32 %v81, 0.6931472
    %v83 = vlog2.pop %v72
    %v84 = vmul.f32 %v83, 0.6931472
    %v85 = vmul.f32 %v73, %v78
    %v86 = vmul.f32 %v74, %v80
    %v87 = vmul.f32 %v75, %v82
    %v88 = vmul.f32 %v76, %v84
    %v89 = vld [vmem:[#allocation7] sm:$0xff]
    %v90 = vadd.f32 %v85, %v86
    %v91 = vadd.f32 %v90, %v87
    %v92 = vadd.f32 %v91, %v88
    %v93 = vadd.f32 %v89, %v92
    %94 = vst [vmem:[#allocation7] sm:$0xff] %v93
    // Predicated region
    $region22: #{tpu_custom_call.1} parent=1 // pred_check
      _
    $region23: #{tpu_custom_call.1} parent=1 // pred_check_branch
      %96 = sbr.rel (0) target = $region25
    $region24: #{tpu_custom_call.1} parent=1 // pred_region
      %98 = vsyncadd [#allocation4], 0
      %s100 = sshll.u32 [#allocation7], 4
      %s101 = int_to_ptr.vmem [resolvable:$true] %s100
      %s102 = sshll.u32 %s2, 4
      %s103 = int_to_ptr.hbm [resolvable:$true] %s102
      %105 = dma.vmem_to_hbm [thread:$0]  %s101, 128, %s103, [#allocation4]
    $region25: #{tpu_custom_call.1} parent=1 // pred_fallthru
      _
    // Predicated region
    $region26: #{tpu_custom_call.1} parent=1 // pred_check
      _
    $region27: #{tpu_custom_call.1} parent=1 // pred_check_branch
      %107 = sbr.rel (0) target = $region29
    $region28: #{tpu_custom_call.1} parent=1 // pred_region
      %109 = dma.done [#allocation4], 128
    $region29: #{tpu_custom_call.1} parent=1 // pred_fallthru
      _
    %110 = vsyncpa [#allocation3], 1
    %111 = vsyncpa [#allocation6], 1
    %112 = vsyncpa [#allocation4], 1

</llo_original>
